<compile_context>
chip_gen: v7x
topology: tpu7x:2x2x1
jax: 0.10.0
libtpu: 0.0.40
codegen_flags: <defaults>
</compile_context>

<pallas_src>
import math
import jax
import jax.numpy as jnp
from jax.experimental import pallas as pl
from jax.experimental.pallas import tpu as pltpu

# ---------------------------------------------------------------------------
# "Symbolic expression" setup.  The PyTorch module uses sympy to parse e.g.
# "x**2 + x + 1" into terms; the parse result is provided directly here
# (sympy parsing is host-side Python, not a kernel op).
# ---------------------------------------------------------------------------
SYMBOLIC_EXPRESSION = "x**2 + x + 1"
TERMS = [
    {"coefficient": 1.0, "exponent": 2},
    {"coefficient": 1.0, "exponent": 1},
    {"coefficient": 1.0, "exponent": 0},
]


def _round_up(n, m):
    return ((n + m - 1) // m) * m


def make_neuron_kernel(sorted_exponents, compute_dtype):
    """Build the Pallas kernel with the polynomial structure baked in.

    sorted_exponents: ascending list of the non-zero exponents; the fused weight
    matrix passed to the kernel must stack W_i^T blocks in the same order.
    """

    def kernel(x_ref, w_ref, b_ref, o_ref):
        x = x_ref[...].astype(jnp.float32)                 # (TB, D), powers in f32
        parts = []
        xp = x
        prev_e = 1
        for e in sorted_exponents:                         # carried power: xp *= x
            for _ in range(e - prev_e):
                xp = xp * x
            prev_e = e
            parts.append(xp)
        xcat = parts[0] if len(parts) == 1 else jnp.concatenate(parts, axis=-1)
        xcat = xcat.astype(compute_dtype)                  # (TB, T*D)
        # single fused MXU matmul, f32 accumulation
        acc = jnp.dot(xcat, w_ref[...], preferred_element_type=jnp.float32)
        # bias already has the constant (exponent==0) terms folded in
        o_ref[...] = (acc + b_ref[...]).astype(o_ref.dtype)

    return kernel


def custom_neuron_layer_2(x, weights_list, bias, terms, *,
                          batch_tile=256, compute_dtype=jnp.float32):
    """Pallas forward equivalent to CustomNeuronLayer_2.forward."""
    B, D = x.shape
    O = weights_list[0].shape[0]
    assert len(weights_list) == len(terms)

    # Split terms: non-constant terms -> fused matmul path; constants -> bias.
    nz = sorted((int(t["exponent"]), i) for i, t in enumerate(terms)
                if int(t["exponent"]) != 0)
    num_const = sum(1 for t in terms if int(t["exponent"]) == 0)
    assert nz, "expression must contain at least one non-constant term"
    exps = [e for e, _ in nz]

    # Fused weight along K: (T*D, O), rows ordered to match the ascending exponents.
    w_cat = jnp.concatenate([weights_list[i].T for _, i in nz], axis=0)
    K = w_cat.shape[0]

    # Fold constant terms into the bias.
    bias_arr = bias if bias is not None else jnp.zeros((O,), jnp.float32)
    bias_eff = bias_arr.astype(jnp.float32) + float(num_const)

    # Lane-dense output: pad O up to a multiple of 128.
    O_pad = _round_up(O, 128)
    w_cat = jnp.pad(w_cat, ((0, 0), (0, O_pad - O))).astype(compute_dtype)
    bias_eff = jnp.pad(bias_eff, (0, O_pad - O)).reshape(1, O_pad)

    # Batch tiling: big M tile, pad ragged B (f32 sublane granule = 8).
    tile = min(batch_tile, _round_up(B, 8))
    B_pad = _round_up(B, tile)
    x_p = jnp.pad(x, ((0, B_pad - B), (0, 0))) if B_pad != B else x

    kernel = make_neuron_kernel(exps, compute_dtype)

    flops = int(2 * B_pad * K * O_pad + B_pad * D * max(0, max(exps) - 1))
    bytes_accessed = int(x_p.size * x_p.dtype.itemsize
                         + w_cat.size * w_cat.dtype.itemsize
                         + bias_eff.size * bias_eff.dtype.itemsize
                         + B_pad * O_pad * 4)

    out = pl.pallas_call(
        kernel,
        out_shape=jax.ShapeDtypeStruct((B_pad, O_pad), jnp.float32),
        grid_spec=pltpu.PrefetchScalarGridSpec(
            num_scalar_prefetch=0,
            grid=(B_pad // tile,),
            in_specs=[
                pl.BlockSpec((tile, D), lambda i: (i, 0)),      # x tile
                pl.BlockSpec((K, O_pad), lambda i: (0, 0)),     # fused weights (grid-invariant)
                pl.BlockSpec((1, O_pad), lambda i: (0, 0)),     # bias (+const terms)
            ],
            out_specs=pl.BlockSpec((tile, O_pad), lambda i: (i, 0)),
        ),
        compiler_params=pltpu.CompilerParams(
            dimension_semantics=("parallel",)),
        cost_estimate=pl.CostEstimate(flops=flops, transcendentals=0,
                                      bytes_accessed=bytes_accessed),
    )(x_p, w_cat, bias_eff)

    return out[:B, :O]


def reference_forward(x, weights_list, bias, terms):
    """Plain-JAX transcription of the PyTorch forward (for verification)."""
    B = x.shape[0]
    O = weights_list[0].shape[0]
    su = jnp.zeros((B, O), jnp.float32)
    for i, term in enumerate(terms):
        e = int(term["exponent"])
        if e == 0:
            su = su + jnp.ones((B, O), jnp.float32)
        else:
            su = su + jnp.matmul(x ** e, weights_list[i].T,
                                 precision=jax.lax.Precision.HIGHEST)
    if bias is not None:
        su = su + bias
    return su


if __name__ == "__main__":
    in_features = 16
    out_features = 32
    batch = 300          # deliberately ragged: exercises batch padding + 2 grid steps

    key = jax.random.PRNGKey(0)
    k_x, k_b, *k_ws = jax.random.split(key, 2 + len(TERMS))

    # Deterministic parameter init mirroring reset_parameters():
    # kaiming_uniform_(a=sqrt(5)) on (O, D) => U(-1/sqrt(fan_in), 1/sqrt(fan_in))
    bound = 1.0 / math.sqrt(in_features)
    weights_list = [
        jax.random.uniform(k_ws[i], (out_features, in_features),
                           jnp.float32, -bound, bound)
        for i in range(len(TERMS))
    ]
    bias = jax.random.uniform(k_b, (out_features,), jnp.float32, -bound, bound)
    x = jax.random.normal(k_x, (batch, in_features), jnp.float32)

    ref = reference_forward(x, weights_list, bias, TERMS)

    # f32 MXU path (exact semantics of the PyTorch module)
    out = custom_neuron_layer_2(x, weights_list, bias, TERMS, batch_tile=256)
    out = jax.block_until_ready(out)
    assert out.shape == (batch, out_features)
    assert jnp.allclose(out, ref, atol=1e-3, rtol=1e-3), "f32 mismatch vs reference"

    # bf16 MXU path (v6e/v7x speed option): powers in f32, dot inputs bf16, f32 acc.
    out_bf16 = jax.block_until_ready(
        custom_neuron_layer_2(x, weights_list, bias, TERMS,
                              batch_tile=256, compute_dtype=jnp.bfloat16))
    assert jnp.allclose(out_bf16, ref, atol=0.5, rtol=0.05), "bf16 mismatch vs reference"

    print("KERNEL_OK")
</pallas_src>

<mosaic_0001>
module attributes {stable_mosaic.version = 11 : i64} {
  func.func @kernel(%arg0: i32, %arg1: memref<256x16xf32, #tpu.memory_space<vmem>>, %arg2: memref<32x128xf32, #tpu.memory_space<vmem>>, %arg3: memref<1x128xf32, #tpu.memory_space<vmem>>, %arg4: memref<256x128xf32, #tpu.memory_space<vmem>>) attributes {dimension_semantics = [#tpu.dimension_semantics<parallel>], iteration_bounds = array<i64: 2>, scalar_prefetch = 0 : i64, scratch_operands = 0 : i64, tpu.core_type = #tpu.core_type<tc>, window_params = [{transform_indices = @transform_0, window_bounds = array<i64: 256, 16>}, {pipeline_mode = #tpu.pipeline_mode<synchronous>, transform_indices = @transform_1, window_bounds = array<i64: 32, 128>}, {pipeline_mode = #tpu.pipeline_mode<synchronous>, transform_indices = @transform_2, window_bounds = array<i64: 1, 128>}, {transform_indices = @transform_3, window_bounds = array<i64: 256, 128>}]} {
    %c0 = arith.constant 0 : index
    %c0_0 = arith.constant 0 : index
    %0 = vector.load %arg1[%c0, %c0_0] : memref<256x16xf32, #tpu.memory_space<vmem>>, vector<256x16xf32>
    %1 = arith.mulf %0, %0 : vector<256x16xf32>
    %2 = tpu.concatenate %0, %1 in 1 : vector<256x16xf32>, vector<256x16xf32> -> vector<256x32xf32>
    %c0_1 = arith.constant 0 : index
    %c0_2 = arith.constant 0 : index
    %3 = vector.load %arg2[%c0_1, %c0_2] : memref<32x128xf32, #tpu.memory_space<vmem>>, vector<32x128xf32>
    %cst = arith.constant dense<0.000000e+00> : vector<256x128xf32>
    %4 = tpu.matmul %2, %3, %cst {dimension_numbers = #tpu.dot_dimension_numbers<[1], [0], [0], [1], [0, 0, 1, 1], [], []>} : vector<256x32xf32>, vector<32x128xf32>, vector<256x128xf32> -> vector<256x128xf32>
    %c0_3 = arith.constant 0 : index
    %c0_4 = arith.constant 0 : index
    %5 = vector.load %arg3[%c0_3, %c0_4] : memref<1x128xf32, #tpu.memory_space<vmem>>, vector<1x128xf32>
    %6 = vector.broadcast %5 : vector<1x128xf32> to vector<256x128xf32>
    %7 = arith.addf %4, %6 : vector<256x128xf32>
    %c0_5 = arith.constant 0 : index
    %c0_6 = arith.constant 0 : index
    %8 = vector.load %arg4[%c0_5, %c0_6] : memref<256x128xf32, #tpu.memory_space<vmem>>, vector<256x128xf32>
    tpu.vector_store %arg4[%c0_5, %c0_6], %7 {strides = array<i32>} : memref<256x128xf32, #tpu.memory_space<vmem>>, vector<256x128xf32>,
    return
  }
  func.func @transform_0(%arg0: i32) -> (i32, i32) {
    %c0_i32 = arith.constant 0 : i32
    %c0_i32_0 = arith.constant 0 : i32
    return %arg0, %c0_i32 : i32, i32
  }
  func.func @transform_1(%arg0: i32) -> (i32, i32) {
    %c0_i32 = arith.constant 0 : i32
    %c0_i32_0 = arith.constant 0 : i32
    %c0_i32_1 = arith.constant 0 : i32
    return %c0_i32, %c0_i32_0 : i32, i32
  }
  func.func @transform_2(%arg0: i32) -> (i32, i32) {
    %c0_i32 = arith.constant 0 : i32
    %c0_i32_0 = arith.constant 0 : i32
    %c0_i32_1 = arith.constant 0 : i32
    return %c0_i32, %c0_i32_0 : i32, i32
  }
  func.func @transform_3(%arg0: i32) -> (i32, i32) {
    %c0_i32 = arith.constant 0 : i32
    %c0_i32_0 = arith.constant 0 : i32
    return %arg0, %c0_i32 : i32, i32
  }
}

</mosaic_0001>

<llo_original>
// kernel: tpu_custom_call.1
$region0: #{tpu_custom_call.1}
  #allocation0 [shape = 'u32[]', space=smem, size = 0x4, offset = 0x4, fixed_abs, tag = 'smem constant byte address 0x4 - core index']
  #allocation1 [shape = 'u32[144,128]{1,0:T(1,128)}', space=vmem, size = 0x12000, scoped, tag = 'internal scratch']
  %s0 = inlined_call_operand.vmem [shape: f32[512,16], index: 0, kind: input, shape index: {}]
  %s1 = inlined_call_operand.vmem [shape: f32[32,128], index: 1, kind: input, shape index: {}]
  %s2 = inlined_call_operand.vmem [shape: f32[1,128], index: 2, kind: input, shape index: {}]
  %s3 = inlined_call_operand.hbm [shape: f32[512,128], index: 3, kind: output, shape index: {}]
  %s4 = sld [smem:[#allocation0]]
  $region45: #{tpu_custom_call.1} parent=0
    _
  %s6 = ssub.s32 1, %s4
  %s7 = scalar_select 0, %s6, %s4
  $region1: #{tpu_custom_call.1} parent=0
    #allocation2 [shape = 'u8[262144]{0}', space=vmem, size = 0x40000, scoped, tag = 'output window, operand 0']
    #allocation3 [shape = 's32[2]{0}', space=sflag, size = 0x8, scoped, tag = 'scoped memory for tpu_custom_call.1']
    %8 = vsyncpa [#allocation3], 0
    %s9 = scalar_lea.sflag [#allocation3], 1
    %10 = vsyncpa %s9, 0
    loop: start=0, step=1, limit=4
    $region2: #{tpu_custom_call.1} parent=1 // loop_pre_header
      _
    $region3: #{tpu_custom_call.1} parent=1 // loop_header
      %s12 = sphi 0, %s16
      %p13 = scmp.ge.s32.totalorder %s12, 4
      %s22 = sphi 0, %s24
      %s25 = sphi 0, %s22
      %s26 = sphi 0, %s25
      %s42 = sphi 0, %s26
      %s46 = sphi 0, %s46
      %s48 = sphi 0, %s46
      %s49 = sphi 0, %s48
      %s63 = sphi 0, %s49
      %s67 = sphi 0, %s67
      %s69 = sphi 0, %s67
      %s70 = sphi 0, %s69
      %s84 = sphi 0, %s70
      %s90 = sphi 0, %s92
      %s93 = sphi 0, %s90
      %s94 = sphi 0, %s93
      %s110 = sphi 0, %s94
    $region4: #{tpu_custom_call.1} parent=1 // loop_header_branch
      %15 = sbr.rel (%p13) target = $region8
    $region5: #{tpu_custom_call.1} parent=1 // loop_body
      %s17 = ssub.s32 %s12, 1
      %s18 = ssub.s32 %s12, 2
      %s19 = sadd.s32 %s12, 1
      %s20 = ssub.s32 %s12, %s19
      %p21 = scmp.eq.s32.totalorder %s20, 0
      %s23 = sadd.s32 %s22, 1
      %s24 = scalar_select %p21, %s22, %s23
      %p27 = pneg %p21
      %p28 = scmp.eq.s32.totalorder %s12, 1
      %p29 = por %p27, %p28
      %p30 = scmp.ne.s32.totalorder %s22, %s25
      %p31 = scmp.eq.s32.totalorder %s12, 0
      %p32 = por %p30, %p31
      %p33 = scmp.ne.s32.totalorder %s22, %s25
      %p34 = scmp.eq.s32.totalorder %s17, 1
      %p35 = por %p33, %p34
      %p36 = scmp.ne.s32.totalorder %s25, %s26
      %p37 = scmp.eq.s32.totalorder %s17, 0
      %p38 = por %p36, %p37
      %p39 = scmp.ne.s32.totalorder %s25, %s26
      %p40 = scmp.eq.s32.totalorder %s18, 1
      %p41 = por %p39, %p40
      %p43 = scmp.ne.s32.totalorder %s26, %s42
      %p44 = scmp.eq.s32.totalorder %s18, 0
      %p45 = por %p43, %p44
      %s47 = sadd.s32 %s46, 1
      %p50 = scmp.eq.s32.totalorder %s12, 1
      %p51 = scmp.ne.s32.totalorder %s46, %s48
      %p52 = scmp.eq.s32.totalorder %s12, 0
      %p53 = por %p51, %p52
      %p54 = scmp.ne.s32.totalorder %s46, %s48
      %p55 = scmp.eq.s32.totalorder %s17, 1
      %p56 = por %p54, %p55
      %p57 = scmp.ne.s32.totalorder %s48, %s49
      %p58 = scmp.eq.s32.totalorder %s17, 0
      %p59 = por %p57, %p58
      %p60 = scmp.ne.s32.totalorder %s48, %s49
      %p61 = scmp.eq.s32.totalorder %s18, 1
      %p62 = por %p60, %p61
      %p64 = scmp.ne.s32.totalorder %s49, %s63
      %p65 = scmp.eq.s32.totalorder %s18, 0
      %p66 = por %p64, %p65
      %s68 = sadd.s32 %s67, 1
      %p71 = scmp.eq.s32.totalorder %s12, 1
      %p72 = scmp.ne.s32.totalorder %s67, %s69
      %p73 = scmp.eq.s32.totalorder %s12, 0
      %p74 = por %p72, %p73
      %p75 = scmp.ne.s32.totalorder %s67, %s69
      %p76 = scmp.eq.s32.totalorder %s17, 1
      %p77 = por %p75, %p76
      %p78 = scmp.ne.s32.totalorder %s69, %s70
      %p79 = scmp.eq.s32.totalorder %s17, 0
      %p80 = por %p78, %p79
      %p81 = scmp.ne.s32.totalorder %s69, %s70
      %p82 = scmp.eq.s32.totalorder %s18, 1
      %p83 = por %p81, %p82
      %p85 = scmp.ne.s32.totalorder %s70, %s84
      %p86 = scmp.eq.s32.totalorder %s18, 0
      %p87 = por %p85, %p86
      %s88 = ssub.s32 %s12, %s19
      %p89 = scmp.eq.s32.totalorder %s88, 0
      %s91 = sadd.s32 %s90, 1
      %s92 = scalar_select %p89, %s90, %s91
      %p95 = pneg %p89
      %p96 = scmp.eq.s32.totalorder %s12, 1
      %p97 = por %p95, %p96
      %p98 = scmp.ne.s32.totalorder %s90, %s93
      %p99 = scmp.eq.s32.totalorder %s12, 0
      %p100 = por %p98, %p99
      %p101 = scmp.ne.s32.totalorder %s90, %s93
      %p102 = scmp.eq.s32.totalorder %s17, 1
      %p103 = por %p101, %p102
      %p104 = scmp.ne.s32.totalorder %s93, %s94
      %p105 = scmp.eq.s32.totalorder %s17, 0
      %p106 = por %p104, %p105
      %p107 = scmp.ne.s32.totalorder %s93, %s94
      %p108 = scmp.eq.s32.totalorder %s18, 1
      %p109 = por %p107, %p108
      %p111 = scmp.ne.s32.totalorder %s94, %s110
      %p112 = scmp.eq.s32.totalorder %s18, 0
      %p113 = por %p111, %p112
      %p114 = scmp.le.s32.totalorder 1, %s12
      %p115 = scmp.lt.s32.totalorder %s12, 3
      %p116 = pnand %p114, %p115
      %p117 = pneg %p116
      // Predicated region
      $region9: #{tpu_custom_call.1} parent=5 // pred_check
        _
      $region10: #{tpu_custom_call.1} parent=5 // pred_check_branch
        %119 = sbr.rel (%p116) target = $region12
      $region11: #{tpu_custom_call.1} parent=5 // pred_region
        %s120 = ssub.s32 %s12, 1
        // Predicated region
        $region13: #{tpu_custom_call.1} parent=11 // pred_check
          %p121 = pneg %p59
        $region14: #{tpu_custom_call.1} parent=11 // pred_check_branch
          %123 = sbr.rel (%p121) target = $region16
        $region15: #{tpu_custom_call.1} parent=11 // pred_region
          _
        $region16: #{tpu_custom_call.1} parent=11 // pred_fallthru
          _
        // Predicated region
        $region17: #{tpu_custom_call.1} parent=11 // pred_check
          %p124 = pneg %p80
        $region18: #{tpu_custom_call.1} parent=11 // pred_check_branch
          %126 = sbr.rel (%p124) target = $region20
        $region19: #{tpu_custom_call.1} parent=11 // pred_region
          _
        $region20: #{tpu_custom_call.1} parent=11 // pred_fallthru
          _
      $region12: #{tpu_custom_call.1} parent=5 // pred_fallthru
        _
      %p127 = scmp.lt.s32.totalorder %s12, 2
      // Predicated region
      $region21: #{tpu_custom_call.1} parent=5 // pred_check
        %p128 = pneg %p127
      $region22: #{tpu_custom_call.1} parent=5 // pred_check_branch
        %130 = sbr.rel (%p128) target = $region24
      $region23: #{tpu_custom_call.1} parent=5 // pred_region
        // Predicated region
        $region25: #{tpu_custom_call.1} parent=23 // pred_check
          %p131 = pneg %p32
        $region26: #{tpu_custom_call.1} parent=23 // pred_check_branch
          %133 = sbr.rel (%p131) target = $region28
        $region27: #{tpu_custom_call.1} parent=23 // pred_region
          %s134 = smul.u32 32, %s12
          %p135 = scmp.lt.s32.totalorder %s134, 63
          %s136 = scalar_select %p135, %s134, 63
          %s137 = smul.addr %s136, 8
          %s138 = scalar_lea.vmem %s0, %s137
          %s139 = smul.u32 32, %s12
        $region28: #{tpu_custom_call.1} parent=23 // pred_fallthru
          _
      $region24: #{tpu_custom_call.1} parent=5 // pred_fallthru
        _
      %p140 = scmp.le.s32.totalorder 1, %s12
      %p141 = scmp.lt.s32.totalorder %s12, 3
      %p142 = pnand %p140, %p141
      %p143 = pneg %p142
      // Predicated region
      $region29: #{tpu_custom_call.1} parent=5 // pred_check
        _
      $region30: #{tpu_custom_call.1} parent=5 // pred_check_branch
        %145 = sbr.rel (%p142) target = $region32
      $region31: #{tpu_custom_call.1} parent=5 // pred_region
        %s146 = ssub.s32 %s12, 1
        %s147 = smul.u32 32, %s17
        %p148 = scmp.lt.s32.totalorder %s147, 63
        %s149 = scalar_select %p148, %s147, 63
        %s150 = smul.addr %s149, 8
        %s151 = scalar_lea.vmem %s0, %s150
        %p152 = pneg %p38
        %p153 = pneg %p35
        %p154 = pneg %p59
        %p155 = pneg %p56
        %p156 = pneg %p80
        %p157 = pneg %p77
        %p158 = pneg %p106
        %p159 = pneg %p103
        %s160 = sand.u32 %s93, 1
        %s161 = scalar_lea.sflag [#allocation3], %s160
        %s162 = sand.u32 %s93, 1
        %s163 = smul.addr %s162, 256
        %s164 = scalar_lea.vmem [#allocation2], %s163
        %s165 = smul.u32 32, %s17
        %p166 = scmp.lt.s32.totalorder %s165, 63
        %s167 = scalar_select %p166, %s165, 63
        %s168 = smul.addr %s167, 8
        %s169 = scalar_lea.vmem %s0, %s168
        %s170 = smul.u32 32, %s17
        %s171 = smul.u32 32, %s17
        %v172 = vld [vmem:[%s169] sm:$0xff]
        %v173 = vld [vmem:[%s169 + $0x8] sm:$0xff]
        %v174 = vld [vmem:[%s169 + $0x10] sm:$0xff]
        %v175 = vld [vmem:[%s169 + $0x18] sm:$0xff]
        %v176 = vld [vmem:[%s169 + $0x20] sm:$0xff]
        %v177 = vld [vmem:[%s169 + $0x28] sm:$0xff]
        %v178 = vld [vmem:[%s169 + $0x30] sm:$0xff]
        %v179 = vld [vmem:[%s169 + $0x38] sm:$0xff]
        %v180 = vld [vmem:[%s169 + $0x40] sm:$0xff]
        %v181 = vld [vmem:[%s169 + $0x48] sm:$0xff]
        %v182 = vld [vmem:[%s169 + $0x50] sm:$0xff]
        %v183 = vld [vmem:[%s169 + $0x58] sm:$0xff]
        %v184 = vld [vmem:[%s169 + $0x60] sm:$0xff]
        %v185 = vld [vmem:[%s169 + $0x68] sm:$0xff]
        %v186 = vld [vmem:[%s169 + $0x70] sm:$0xff]
        %v187 = vld [vmem:[%s169 + $0x78] sm:$0xff]
        %v188 = vld [vmem:[%s169 + $0x80] sm:$0xff]
        %v189 = vld [vmem:[%s169 + $0x88] sm:$0xff]
        %v190 = vld [vmem:[%s169 + $0x90] sm:$0xff]
        %v191 = vld [vmem:[%s169 + $0x98] sm:$0xff]
        %v192 = vld [vmem:[%s169 + $0xa0] sm:$0xff]
        %v193 = vld [vmem:[%s169 + $0xa8] sm:$0xff]
        %v194 = vld [vmem:[%s169 + $0xb0] sm:$0xff]
        %v195 = vld [vmem:[%s169 + $0xb8] sm:$0xff]
        %v196 = vld [vmem:[%s169 + $0xc0] sm:$0xff]
        %v197 = vld [vmem:[%s169 + $0xc8] sm:$0xff]
        %v198 = vld [vmem:[%s169 + $0xd0] sm:$0xff]
        %v199 = vld [vmem:[%s169 + $0xd8] sm:$0xff]
        %v200 = vld [vmem:[%s169 + $0xe0] sm:$0xff]
        %v201 = vld [vmem:[%s169 + $0xe8] sm:$0xff]
        %v202 = vld [vmem:[%s169 + $0xf0] sm:$0xff]
        %v203 = vld [vmem:[%s169 + $0xf8] sm:$0xff]
        %v204 = vmul.f32 %v172, %v172
        %v205 = vmul.f32 %v173, %v173
        %v206 = vmul.f32 %v174, %v174
        %v207 = vmul.f32 %v175, %v175
        %v208 = vmul.f32 %v176, %v176
        %v209 = vmul.f32 %v177, %v177
        %v210 = vmul.f32 %v178, %v178
        %v211 = vmul.f32 %v179, %v179
        %v212 = vmul.f32 %v180, %v180
        %v213 = vmul.f32 %v181, %v181
        %v214 = vmul.f32 %v182, %v182
        %v215 = vmul.f32 %v183, %v183
        %v216 = vmul.f32 %v184, %v184
        %v217 = vmul.f32 %v185, %v185
        %v218 = vmul.f32 %v186, %v186
        %v219 = vmul.f32 %v187, %v187
        %v220 = vmul.f32 %v188, %v188
        %v221 = vmul.f32 %v189, %v189
        %v222 = vmul.f32 %v190, %v190
        %v223 = vmul.f32 %v191, %v191
        %v224 = vmul.f32 %v192, %v192
        %v225 = vmul.f32 %v193, %v193
        %v226 = vmul.f32 %v194, %v194
        %v227 = vmul.f32 %v195, %v195
        %v228 = vmul.f32 %v196, %v196
        %v229 = vmul.f32 %v197, %v197
        %v230 = vmul.f32 %v198, %v198
        %v231 = vmul.f32 %v199, %v199
        %v232 = vmul.f32 %v200, %v200
        %v233 = vmul.f32 %v201, %v201
        %v234 = vmul.f32 %v202, %v202
        %v235 = vmul.f32 %v203, %v203
        %268 = vrot.lane.b32.xlu0 %v204, 16
        %v269 = vpop.permute.xlu0 %268
        %270 = vrot.lane.b32.xlu0 %v205, 16
        %v271 = vpop.permute.xlu0 %270
        %272 = vrot.lane.b32.xlu0 %v206, 16
        %v273 = vpop.permute.xlu0 %272
        %274 = vrot.lane.b32.xlu0 %v207, 16
        %v275 = vpop.permute.xlu0 %274
        %276 = vrot.lane.b32.xlu0 %v208, 16
        %v277 = vpop.permute.xlu0 %276
        %278 = vrot.lane.b32.xlu0 %v209, 16
        %v279 = vpop.permute.xlu0 %278
        %280 = vrot.lane.b32.xlu0 %v210, 16
        %v281 = vpop.permute.xlu0 %280
        %282 = vrot.lane.b32.xlu0 %v211, 16
        %v283 = vpop.permute.xlu0 %282
        %284 = vrot.lane.b32.xlu0 %v212, 16
        %v285 = vpop.permute.xlu0 %284
        %286 = vrot.lane.b32.xlu0 %v213, 16
        %v287 = vpop.permute.xlu0 %286
        %288 = vrot.lane.b32.xlu0 %v214, 16
        %v289 = vpop.permute.xlu0 %288
        %290 = vrot.lane.b32.xlu0 %v215, 16
        %v291 = vpop.permute.xlu0 %290
        %292 = vrot.lane.b32.xlu0 %v216, 16
        %v293 = vpop.permute.xlu0 %292
        %294 = vrot.lane.b32.xlu0 %v217, 16
        %v295 = vpop.permute.xlu0 %294
        %296 = vrot.lane.b32.xlu0 %v218, 16
        %v297 = vpop.permute.xlu0 %296
        %298 = vrot.lane.b32.xlu0 %v219, 16
        %v299 = vpop.permute.xlu0 %298
        %300 = vrot.lane.b32.xlu0 %v220, 16
        %v301 = vpop.permute.xlu0 %300
        %302 = vrot.lane.b32.xlu0 %v221, 16
        %v303 = vpop.permute.xlu0 %302
        %304 = vrot.lane.b32.xlu0 %v222, 16
        %v305 = vpop.permute.xlu0 %304
        %306 = vrot.lane.b32.xlu0 %v223, 16
        %v307 = vpop.permute.xlu0 %306
        %308 = vrot.lane.b32.xlu0 %v224, 16
        %v309 = vpop.permute.xlu0 %308
        %310 = vrot.lane.b32.xlu0 %v225, 16
        %v311 = vpop.permute.xlu0 %310
        %312 = vrot.lane.b32.xlu0 %v226, 16
        %v313 = vpop.permute.xlu0 %312
        %314 = vrot.lane.b32.xlu0 %v227, 16
        %v315 = vpop.permute.xlu0 %314
        %316 = vrot.lane.b32.xlu0 %v228, 16
        %v317 = vpop.permute.xlu0 %316
        %318 = vrot.lane.b32.xlu0 %v229, 16
        %v319 = vpop.permute.xlu0 %318
        %320 = vrot.lane.b32.xlu0 %v230, 16
        %v321 = vpop.permute.xlu0 %320
        %322 = vrot.lane.b32.xlu0 %v231, 16
        %v323 = vpop.permute.xlu0 %322
        %324 = vrot.lane.b32.xlu0 %v232, 16
        %v325 = vpop.permute.xlu0 %324
        %326 = vrot.lane.b32.xlu0 %v233, 16
        %v327 = vpop.permute.xlu0 %326
        %328 = vrot.lane.b32.xlu0 %v234, 16
        %v329 = vpop.permute.xlu0 %328
        %330 = vrot.lane.b32.xlu0 %v235, 16
        %v331 = vpop.permute.xlu0 %330
        %vm364 = vcmask 130048
        %v365 = vsel %vm364, %v172, %v269
        %v366 = vsel %vm364, %v173, %v271
        %v367 = vsel %vm364, %v174, %v273
        %v368 = vsel %vm364, %v175, %v275
        %v369 = vsel %vm364, %v176, %v277
        %v370 = vsel %vm364, %v177, %v279
        %v371 = vsel %vm364, %v178, %v281
        %v372 = vsel %vm364, %v179, %v283
        %v373 = vsel %vm364, %v180, %v285
        %v374 = vsel %vm364, %v181, %v287
        %v375 = vsel %vm364, %v182, %v289
        %v376 = vsel %vm364, %v183, %v291
        %v377 = vsel %vm364, %v184, %v293
        %v378 = vsel %vm364, %v185, %v295
        %v379 = vsel %vm364, %v186, %v297
        %v380 = vsel %vm364, %v187, %v299
        %v381 = vsel %vm364, %v188, %v301
        %v382 = vsel %vm364, %v189, %v303
        %v383 = vsel %vm364, %v190, %v305
        %v384 = vsel %vm364, %v191, %v307
        %v385 = vsel %vm364, %v192, %v309
        %v386 = vsel %vm364, %v193, %v311
        %v387 = vsel %vm364, %v194, %v313
        %v388 = vsel %vm364, %v195, %v315
        %v389 = vsel %vm364, %v196, %v317
        %v390 = vsel %vm364, %v197, %v319
        %v391 = vsel %vm364, %v198, %v321
        %v392 = vsel %vm364, %v199, %v323
        %v393 = vsel %vm364, %v200, %v325
        %v394 = vsel %vm364, %v201, %v327
        %v395 = vsel %vm364, %v202, %v329
        %v396 = vsel %vm364, %v203, %v331
        %v397 = vld [vmem:[%s1] sm:$0xff]
        %v398 = vld [vmem:[%s1 + $0x8] sm:$0xff]
        %v399 = vld [vmem:[%s1 + $0x10] sm:$0xff]
        %v400 = vld [vmem:[%s1 + $0x18] sm:$0xff]
        %v401 = vld [vmem:[%s2] sm:$0x1]
        %v403 = vlaneseq
        %v404 = vshrl.u32 %v403, 7
        %v405 = vsub.s32 0, %v404
        %v406 = vrot.slane %v401, %v405
        %vm408 = vcmask 261120
        %v410 = vsel %vm408, %v365, 0
        %v413 = vsel %vm408, %v366, 0
        %v416 = vsel %vm408, %v367, 0
        %v419 = vsel %vm408, %v368, 0
        %v422 = vsel %vm408, %v369, 0
        %v425 = vsel %vm408, %v370, 0
        %v428 = vsel %vm408, %v371, 0
        %v431 = vsel %vm408, %v372, 0
        %v434 = vsel %vm408, %v373, 0
        %v437 = vsel %vm408, %v374, 0
        %v440 = vsel %vm408, %v375, 0
        %v443 = vsel %vm408, %v376, 0
        %v446 = vsel %vm408, %v377, 0
        %v449 = vsel %vm408, %v378, 0
        %v452 = vsel %vm408, %v379, 0
        %v455 = vsel %vm408, %v380, 0
        %v458 = vsel %vm408, %v381, 0
        %v461 = vsel %vm408, %v382, 0
        %v464 = vsel %vm408, %v383, 0
        %v467 = vsel %vm408, %v384, 0
        %v470 = vsel %vm408, %v385, 0
        %v473 = vsel %vm408, %v386, 0
        %v476 = vsel %vm408, %v387, 0
        %v479 = vsel %vm408, %v388, 0
        %v482 = vsel %vm408, %v389, 0
        %v485 = vsel %vm408, %v390, 0
        %v488 = vsel %vm408, %v391, 0
        %v491 = vsel %vm408, %v392, 0
        %v494 = vsel %vm408, %v393, 0
        %v497 = vsel %vm408, %v394, 0
        %v500 = vsel %vm408, %v395, 0
        %v503 = vsel %vm408, %v396, 0
        %505 = vmatprep.subr.mxu0 0.0
        %506 = vmatpush1.msra.mxu0 %v397
        %507 = vmatprep.subr.mxu0 0.0
        %508 = vmatpush1.msra.mxu0 %v398
        %509 = vmatprep.subr.mxu0 0.0
        %510 = vmatpush1.msra.mxu0 %v399
        %511 = vmatprep.subr.mxu0 0.0
        %512 = vmatpush1.msra.mxu0 %v400
        %513 = vmatprep.subr.mxu0 0.0
        %514 = vmatpush1.msra.mxu0 0.0
        %515 = vmatprep.subr.mxu0 0.0
        %516 = vmatpush1.msra.mxu0 0.0
        %517 = vmatprep.subr.mxu0 0.0
        %518 = vmatpush1.msra.mxu0 0.0
        %519 = vmatprep.subr.mxu0 0.0
        %520 = vmatpush1.msra.mxu0 0.0
        %521 = vmatprep.subr.mxu0 0.0
        %522 = vmatpush1.msra.mxu0 0.0
        %523 = vmatprep.subr.mxu0 0.0
        %524 = vmatpush1.msra.mxu0 0.0
        %525 = vmatprep.subr.mxu0 0.0
        %526 = vmatpush1.msra.mxu0 0.0
        %527 = vmatprep.subr.mxu0 0.0
        %528 = vmatpush1.msra.mxu0 0.0
        %529 = vmatprep.subr.mxu0 0.0
        %530 = vmatpush1.msra.mxu0 0.0
        %531 = vmatprep.subr.mxu0 0.0
        %532 = vmatpush1.msra.mxu0 0.0
        %533 = vmatprep.subr.mxu0 0.0
        %534 = vmatpush1.msra.mxu0 0.0
        %535 = vmatprep.subr.mxu0 0.0
        %536 = vmatpush1.msra.mxu0 0.0
        %537 = vmatprep.subr.mxu0 0.0
        %538 = vmatpush1.msra.mxu0 0.0
        %539 = vmatprep.subr.mxu0 0.0
        %540 = vmatpush1.msra.mxu0 0.0
        %541 = vmatprep.subr.mxu0 0.0
        %542 = vmatpush1.msra.mxu0 0.0
        %543 = vmatprep.subr.mxu0 0.0
        %544 = vmatpush1.msra.mxu0 0.0
        %545 = vmatprep.subr.mxu0 0.0
        %546 = vmatpush1.msra.mxu0 0.0
        %547 = vmatprep.subr.mxu0 0.0
        %548 = vmatpush1.msra.mxu0 0.0
        %549 = vmatprep.subr.mxu0 0.0
        %550 = vmatpush1.msra.mxu0 0.0
        %551 = vmatprep.subr.mxu0 0.0
        %552 = vmatpush1.msra.mxu0 0.0
        %553 = vmatprep.subr.mxu0 0.0
        %554 = vmatpush1.msra.mxu0 0.0
        %555 = vmatprep.subr.mxu0 0.0
        %556 = vmatpush1.msra.mxu0 0.0
        %557 = vmatprep.subr.mxu0 0.0
        %558 = vmatpush1.msra.mxu0 0.0
        %559 = vmatprep.subr.mxu0 0.0
        %560 = vmatpush1.msra.mxu0 0.0
        %561 = vmatprep.subr.mxu0 0.0
        %562 = vmatpush1.msra.mxu0 0.0
        %563 = vmatprep.subr.mxu0 0.0
        %564 = vmatpush1.msra.mxu0 0.0
        %565 = vmatprep.subr.mxu0 0.0
        %566 = vmatpush1.msra.mxu0 0.0
        %567 = vmatprep.subr.mxu0 0.0
        %568 = vmatpush1.msra.mxu0 0.0
        %569 = vmatprep.mubr.f32.mxu0 0.0
        %570 = vmatmul.mubr.f32.gmra.mrb[0].mxu0 %v410
        %v571 = vpop.f32.mrb[0].mxu0
        %v572 = vadd.f32 %v406, %v571
        %v573 = vpop.f32.mrb[0].mxu0
        %574 = vmatprep.mubr.f32.mxu0 0.0
        %575 = vmatmul.mubr.f32.gmra.mrb[0].mxu0 %v413
        %v576 = vpop.f32.mrb[0].mxu0
        %v577 = vadd.f32 %v406, %v576
        %v578 = vpop.f32.mrb[0].mxu0
        %579 = vmatprep.mubr.f32.mxu0 0.0
        %580 = vmatmul.mubr.f32.gmra.mrb[0].mxu0 %v416
        %v581 = vpop.f32.mrb[0].mxu0
        %v582 = vadd.f32 %v406, %v581
        %v583 = vpop.f32.mrb[0].mxu0
        %584 = vmatprep.mubr.f32.mxu0 0.0
        %585 = vmatmul.mubr.f32.gmra.mrb[0].mxu0 %v419
        %v586 = vpop.f32.mrb[0].mxu0
        %v587 = vadd.f32 %v406, %v586
        %v588 = vpop.f32.mrb[0].mxu0
        %589 = vmatprep.mubr.f32.mxu0 0.0
        %590 = vmatmul.mubr.f32.gmra.mrb[0].mxu0 %v422
        %v591 = vpop.f32.mrb[0].mxu0
        %v592 = vadd.f32 %v406, %v591
        %v593 = vpop.f32.mrb[0].mxu0
        %594 = vmatprep.mubr.f32.mxu0 0.0
        %595 = vmatmul.mubr.f32.gmra.mrb[0].mxu0 %v425
        %v596 = vpop.f32.mrb[0].mxu0
        %v597 = vadd.f32 %v406, %v596
        %v598 = vpop.f32.mrb[0].mxu0
        %599 = vmatprep.mubr.f32.mxu0 0.0
        %600 = vmatmul.mubr.f32.gmra.mrb[0].mxu0 %v428
        %v601 = vpop.f32.mrb[0].mxu0
        %v602 = vadd.f32 %v406, %v601
        %v603 = vpop.f32.mrb[0].mxu0
        %604 = vmatprep.mubr.f32.mxu0 0.0
        %605 = vmatmul.mubr.f32.gmra.mrb[0].mxu0 %v431
        %v606 = vpop.f32.mrb[0].mxu0
        %v607 = vadd.f32 %v406, %v606
        %v608 = vpop.f32.mrb[0].mxu0
        %609 = vmatprep.mubr.f32.mxu0 0.0
        %610 = vmatmul.mubr.f32.gmra.mrb[0].mxu0 %v434
        %v611 = vpop.f32.mrb[0].mxu0
        %v612 = vadd.f32 %v406, %v611
        %v613 = vpop.f32.mrb[0].mxu0
        %614 = vmatprep.mubr.f32.mxu0 0.0
        %615 = vmatmul.mubr.f32.gmra.mrb[0].mxu0 %v437
        %v616 = vpop.f32.mrb[0].mxu0
        %v617 = vadd.f32 %v406, %v616
        %v618 = vpop.f32.mrb[0].mxu0
        %619 = vmatprep.mubr.f32.mxu0 0.0
        %620 = vmatmul.mubr.f32.gmra.mrb[0].mxu0 %v440
        %v621 = vpop.f32.mrb[0].mxu0
        %v622 = vadd.f32 %v406, %v621
        %v623 = vpop.f32.mrb[0].mxu0
        %624 = vmatprep.mubr.f32.mxu0 0.0
        %625 = vmatmul.mubr.f32.gmra.mrb[0].mxu0 %v443
        %v626 = vpop.f32.mrb[0].mxu0
        %v627 = vadd.f32 %v406, %v626
        %v628 = vpop.f32.mrb[0].mxu0
        %629 = vmatprep.mubr.f32.mxu0 0.0
        %630 = vmatmul.mubr.f32.gmra.mrb[0].mxu0 %v446
        %v631 = vpop.f32.mrb[0].mxu0
        %v632 = vadd.f32 %v406, %v631
        %v633 = vpop.f32.mrb[0].mxu0
        %634 = vmatprep.mubr.f32.mxu0 0.0
        %635 = vmatmul.mubr.f32.gmra.mrb[0].mxu0 %v449
        %v636 = vpop.f32.mrb[0].mxu0
        %v637 = vadd.f32 %v406, %v636
        %v638 = vpop.f32.mrb[0].mxu0
        %639 = vmatprep.mubr.f32.mxu0 0.0
        %640 = vmatmul.mubr.f32.gmra.mrb[0].mxu0 %v452
        %v641 = vpop.f32.mrb[0].mxu0
        %v642 = vadd.f32 %v406, %v641
        %v643 = vpop.f32.mrb[0].mxu0
        %644 = vmatprep.mubr.f32.mxu0 0.0
        %645 = vmatmul.mubr.f32.gmra.mrb[0].mxu0 %v455
        %v646 = vpop.f32.mrb[0].mxu0
        %v647 = vadd.f32 %v406, %v646
        %v648 = vpop.f32.mrb[0].mxu0
        %649 = vmatprep.mubr.f32.mxu0 0.0
        %650 = vmatmul.mubr.f32.gmra.mrb[0].mxu0 %v458
        %v651 = vpop.f32.mrb[0].mxu0
        %v652 = vadd.f32 %v406, %v651
        %v653 = vpop.f32.mrb[0].mxu0
        %654 = vmatprep.mubr.f32.mxu0 0.0
        %655 = vmatmul.mubr.f32.gmra.mrb[0].mxu0 %v461
        %v656 = vpop.f32.mrb[0].mxu0
        %v657 = vadd.f32 %v406, %v656
        %v658 = vpop.f32.mrb[0].mxu0
        %659 = vmatprep.mubr.f32.mxu0 0.0
        %660 = vmatmul.mubr.f32.gmra.mrb[0].mxu0 %v464
        %v661 = vpop.f32.mrb[0].mxu0
        %v662 = vadd.f32 %v406, %v661
        %v663 = vpop.f32.mrb[0].mxu0
        %664 = vmatprep.mubr.f32.mxu0 0.0
        %665 = vmatmul.mubr.f32.gmra.mrb[0].mxu0 %v467
        %v666 = vpop.f32.mrb[0].mxu0
        %v667 = vadd.f32 %v406, %v666
        %v668 = vpop.f32.mrb[0].mxu0
        %669 = vmatprep.mubr.f32.mxu0 0.0
        %670 = vmatmul.mubr.f32.gmra.mrb[0].mxu0 %v470
        %v671 = vpop.f32.mrb[0].mxu0
        %v672 = vadd.f32 %v406, %v671
        %v673 = vpop.f32.mrb[0].mxu0
        %674 = vmatprep.mubr.f32.mxu0 0.0
        %675 = vmatmul.mubr.f32.gmra.mrb[0].mxu0 %v473
        %v676 = vpop.f32.mrb[0].mxu0
        %v677 = vadd.f32 %v406, %v676
        %v678 = vpop.f32.mrb[0].mxu0
        %679 = vmatprep.mubr.f32.mxu0 0.0
        %680 = vmatmul.mubr.f32.gmra.mrb[0].mxu0 %v476
        %v681 = vpop.f32.mrb[0].mxu0
        %v682 = vadd.f32 %v406, %v681
        %v683 = vpop.f32.mrb[0].mxu0
        %684 = vmatprep.mubr.f32.mxu0 0.0
        %685 = vmatmul.mubr.f32.gmra.mrb[0].mxu0 %v479
        %v686 = vpop.f32.mrb[0].mxu0
        %v687 = vadd.f32 %v406, %v686
        %v688 = vpop.f32.mrb[0].mxu0
        %689 = vmatprep.mubr.f32.mxu0 0.0
        %690 = vmatmul.mubr.f32.gmra.mrb[0].mxu0 %v482
        %v691 = vpop.f32.mrb[0].mxu0
        %v692 = vadd.f32 %v406, %v691
        %v693 = vpop.f32.mrb[0].mxu0
        %694 = vmatprep.mubr.f32.mxu0 0.0
        %695 = vmatmul.mubr.f32.gmra.mrb[0].mxu0 %v485
        %v696 = vpop.f32.mrb[0].mxu0
        %v697 = vadd.f32 %v406, %v696
        %v698 = vpop.f32.mrb[0].mxu0
        %699 = vmatprep.mubr.f32.mxu0 0.0
        %700 = vmatmul.mubr.f32.gmra.mrb[0].mxu0 %v488
        %v701 = vpop.f32.mrb[0].mxu0
        %v702 = vadd.f32 %v406, %v701
        %v703 = vpop.f32.mrb[0].mxu0
        %704 = vmatprep.mubr.f32.mxu0 0.0
        %705 = vmatmul.mubr.f32.gmra.mrb[0].mxu0 %v491
        %v706 = vpop.f32.mrb[0].mxu0
        %v707 = vadd.f32 %v406, %v706
        %v708 = vpop.f32.mrb[0].mxu0
        %709 = vmatprep.mubr.f32.mxu0 0.0
        %710 = vmatmul.mubr.f32.gmra.mrb[0].mxu0 %v494
        %v711 = vpop.f32.mrb[0].mxu0
        %v712 = vadd.f32 %v406, %v711
        %v713 = vpop.f32.mrb[0].mxu0
        %714 = vmatprep.mubr.f32.mxu0 0.0
        %715 = vmatmul.mubr.f32.gmra.mrb[0].mxu0 %v497
        %v716 = vpop.f32.mrb[0].mxu0
        %v717 = vadd.f32 %v406, %v716
        %v718 = vpop.f32.mrb[0].mxu0
        %719 = vmatprep.mubr.f32.mxu0 0.0
        %720 = vmatmul.mubr.f32.gmra.mrb[0].mxu0 %v500
        %v721 = vpop.f32.mrb[0].mxu0
        %v722 = vadd.f32 %v406, %v721
        %v723 = vpop.f32.mrb[0].mxu0
        %724 = vmatprep.mubr.f32.mxu0 0.0
        %725 = vmatmul.mubr.f32.gmra.mrb[0].mxu0 %v503
        %v726 = vpop.f32.mrb[0].mxu0
        %v727 = vadd.f32 %v406, %v726
        %v728 = vpop.f32.mrb[0].mxu0
        %729 = vdwg.mxu0
        %730 = vst [vmem:[%s164] sm:$0xff] %v572
        %731 = vst [vmem:[%s164 + $0x8] sm:$0xff] %v577
        %732 = vst [vmem:[%s164 + $0x10] sm:$0xff] %v582
        %733 = vst [vmem:[%s164 + $0x18] sm:$0xff] %v587
        %734 = vst [vmem:[%s164 + $0x20] sm:$0xff] %v592
        %735 = vst [vmem:[%s164 + $0x28] sm:$0xff] %v597
        %736 = vst [vmem:[%s164 + $0x30] sm:$0xff] %v602
        %737 = vst [vmem:[%s164 + $0x38] sm:$0xff] %v607
        %738 = vst [vmem:[%s164 + $0x40] sm:$0xff] %v612
        %739 = vst [vmem:[%s164 + $0x48] sm:$0xff] %v617
        %740 = vst [vmem:[%s164 + $0x50] sm:$0xff] %v622
        %741 = vst [vmem:[%s164 + $0x58] sm:$0xff] %v627
        %742 = vst [vmem:[%s164 + $0x60] sm:$0xff] %v632
        %743 = vst [vmem:[%s164 + $0x68] sm:$0xff] %v637
        %744 = vst [vmem:[%s164 + $0x70] sm:$0xff] %v642
        %745 = vst [vmem:[%s164 + $0x78] sm:$0xff] %v647
        %746 = vst [vmem:[%s164 + $0x80] sm:$0xff] %v652
        %747 = vst [vmem:[%s164 + $0x88] sm:$0xff] %v657
        %748 = vst [vmem:[%s164 + $0x90] sm:$0xff] %v662
        %749 = vst [vmem:[%s164 + $0x98] sm:$0xff] %v667
        %750 = vst [vmem:[%s164 + $0xa0] sm:$0xff] %v672
        %751 = vst [vmem:[%s164 + $0xa8] sm:$0xff] %v677
        %752 = vst [vmem:[%s164 + $0xb0] sm:$0xff] %v682
        %753 = vst [vmem:[%s164 + $0xb8] sm:$0xff] %v687
        %754 = vst [vmem:[%s164 + $0xc0] sm:$0xff] %v692
        %755 = vst [vmem:[%s164 + $0xc8] sm:$0xff] %v697
        %756 = vst [vmem:[%s164 + $0xd0] sm:$0xff] %v702
        %757 = vst [vmem:[%s164 + $0xd8] sm:$0xff] %v707
        %758 = vst [vmem:[%s164 + $0xe0] sm:$0xff] %v712
        %759 = vst [vmem:[%s164 + $0xe8] sm:$0xff] %v717
        %760 = vst [vmem:[%s164 + $0xf0] sm:$0xff] %v722
        %761 = vst [vmem:[%s164 + $0xf8] sm:$0xff] %v727
        %s762 = sand.u32 %s93, 1
        %s763 = scalar_lea.sflag [#allocation3], %s762
        %s764 = sand.u32 %s93, 1
        %s765 = smul.addr %s764, 256
        %s766 = scalar_lea.vmem [#allocation2], %s765
        // Predicated region
        $region33: #{tpu_custom_call.1} parent=31 // pred_check
          %p767 = pneg %p103
        $region34: #{tpu_custom_call.1} parent=31 // pred_check_branch
          %769 = sbr.rel (%p767) target = $region36
        $region35: #{tpu_custom_call.1} parent=31 // pred_region
          %s770 = smul.u32 32, %s17
          %s772 = ssub.s32 4096, 4096
          %773 = vsyncadd %s763, %s772
          %s774 = smul.addr %s770, 128
          %s775 = scalar_lea.hbm %s3, %s774
          %s776 = sshll.u32 %s766, 4
          %s777 = int_to_ptr.vmem [resolvable:$true] %s776
          %782 = dma.vmem_to_hbm [thread:$0]  %s777, 4096, %s775, %s763, 128, 128, 8
        $region36: #{tpu_custom_call.1} parent=31 // pred_fallthru
          _
      $region32: #{tpu_custom_call.1} parent=5 // pred_fallthru
        _
      %p783 = scmp.le.s32.totalorder 2, %s12
      // Predicated region
      $region37: #{tpu_custom_call.1} parent=5 // pred_check
        %p784 = pneg %p783
      $region38: #{tpu_custom_call.1} parent=5 // pred_check_branch
        %786 = sbr.rel (%p784) target = $region40
      $region39: #{tpu_custom_call.1} parent=5 // pred_region
        %s787 = ssub.s32 %s12, 2
        // Predicated region
        $region41: #{tpu_custom_call.1} parent=39 // pred_check
          %p788 = pneg %p109
        $region42: #{tpu_custom_call.1} parent=39 // pred_check_branch
          %790 = sbr.rel (%p788) target = $region44
        $region43: #{tpu_custom_call.1} parent=39 // pred_region
          %s791 = sand.u32 %s94, 1
          %s792 = scalar_lea.sflag [#allocation3], %s791
          %s793 = sand.u32 %s94, 1
          %s794 = smul.addr %s793, 256
          %s795 = scalar_lea.vmem [#allocation2], %s794
          %796 = dma.done %s792, 4096
        $region44: #{tpu_custom_call.1} parent=39 // pred_fallthru
          _
      $region40: #{tpu_custom_call.1} parent=5 // pred_fallthru
        _
    $region6: #{tpu_custom_call.1} parent=1 // loop_footer
      %s16 = sadd.s32 1, %s12
    $region7: #{tpu_custom_call.1} parent=1 // loop_footer_branch
      %11 = sbr.rel target = $region3
    $region8: #{tpu_custom_call.1} parent=1 // loop_exit
      _
    %797 = vsyncpa [#allocation3], 1
    %s798 = scalar_lea.sflag [#allocation3], 1
    %799 = vsyncpa %s798, 1

</llo_original>
